<compile_context>
chip_gen: v7x
topology: tpu7x:2x2x1
jax: 0.10.0
libtpu: 0.0.40
codegen_flags: <defaults>
</compile_context>

<pallas_src>
import functools

import jax
import jax.numpy as jnp
from jax.experimental import pallas as pl
from jax.experimental.pallas import tpu as pltpu


def _se_kernel(x_ref, w1_ref, b1_ref, w2_ref, b2_ref, o_ref, acc_ref,
               *, hw_total, tile_hw, need_mask):
    """One (batch-tile, spatial-tile) grid step.

    x_ref:  (1, C, tile_hw) activation tile (native dtype).
    w1_ref: (C, Cr)  compress weight,  b1_ref: (1, Cr)
    w2_ref: (Cr, C)  excitation weight, b2_ref: (1, C)
    o_ref:  (1, 1, C) sigmoid gate output.
    acc_ref: (1, C) f32 running spatial sum (VMEM scratch).
    """
    hw = pl.program_id(1)

    # --- init accumulator at the first spatial tile of this image ---
    @pl.when(hw == 0)
    def _():
        acc_ref[...] = jnp.zeros_like(acc_ref)

    # --- partial spatial sum (lane-axis reduction), f32 accumulation ---
    x = x_ref[...]                                     # (1, C, tile_hw)
    if need_mask:
        # H*W is not a multiple of tile_hw: mask out-of-range (padded) lanes.
        lane = jax.lax.broadcasted_iota(jnp.int32, x.shape, 2)
        valid = (hw * tile_hw + lane) < hw_total
        x = jnp.where(valid, x, jnp.zeros_like(x))
    acc_ref[...] += jnp.sum(x, axis=2, dtype=jnp.float32)   # (1, C)

    # --- finalize: mean, compress+ReLU, excite+sigmoid, write gate ---
    @pl.when(hw == pl.num_programs(1) - 1)
    def _():
        pooled = acc_ref[...] * jnp.float32(1.0 / hw_total)          # (1, C)
        h = jnp.dot(pooled, w1_ref[...].astype(jnp.float32),
                    preferred_element_type=jnp.float32)
        h = jnp.maximum(h + b1_ref[...].astype(jnp.float32), 0.0)    # (1, Cr)
        s = jnp.dot(h, w2_ref[...].astype(jnp.float32),
                    preferred_element_type=jnp.float32)
        s = jax.nn.sigmoid(s + b2_ref[...].astype(jnp.float32))      # (1, C)
        o_ref[...] = s.reshape(o_ref.shape).astype(o_ref.dtype)


def _auto_tile_hw(hw_total, channels, itemsize, vmem_budget_bytes=8 << 20):
    """Largest spatial tile whose double-buffered copy stays under budget.

    Budget is intentionally conservative (~8 MiB x 2 buffers) so it fits the
    default scoped VMEM on v5e/v6e (32/128 MiB) and v7x (32/64 MiB).
    """
    max_elems = max(128, vmem_budget_bytes // (2 * max(channels, 1) * itemsize))
    if hw_total <= max_elems:
        return hw_total                      # whole spatial extent in one block
    return max(128, (max_elems // 128) * 128)  # lane-aligned multiple of 128


def se_forward(x_nchw, w1, b1, w2, b2, *, tile_hw=None):
    """SE-gate forward.

    Args:
      x_nchw: (B, C, H, W) activations (PyTorch NCHW convention).
      w1: (C, C//r)   compress 1x1-conv weight, laid out as (in, out).
      b1: (C//r,)     compress bias.
      w2: (C//r, C)   excitation 1x1-conv weight, (in, out).
      b2: (C,)        excitation bias.
      tile_hw: optional spatial tile size (must be H*W or a multiple of 128).

    Returns:
      (B, C, 1, 1) sigmoid gates, matching the PyTorch SE module.
    """
    B, C, H, W = x_nchw.shape
    HW = H * W
    Cr = w1.shape[1]

    # Free reshape (no data movement): channels on sublanes, spatial on lanes.
    x = x_nchw.reshape(B, C, HW)
    b1_2d = b1.reshape(1, Cr)
    b2_2d = b2.reshape(1, C)

    if tile_hw is None:
        tile_hw = _auto_tile_hw(HW, C, x.dtype.itemsize)
    assert tile_hw == HW or tile_hw % 128 == 0, (
        f"tile_hw={tile_hw} must equal H*W or be a multiple of 128")

    hw_tiles = pl.cdiv(HW, tile_hw)
    need_mask = (HW % tile_hw) != 0

    kernel = functools.partial(_se_kernel, hw_total=HW, tile_hw=tile_hw,
                               need_mask=need_mask)

    out = pl.pallas_call(
        kernel,
        out_shape=jax.ShapeDtypeStruct((B, 1, C), x_nchw.dtype),
        grid_spec=pltpu.PrefetchScalarGridSpec(
            num_scalar_prefetch=0,
            grid=(B, hw_tiles),
            in_specs=[
                # Activation: tiled over batch and spatial axes.
                pl.BlockSpec((1, C, tile_hw), lambda b, hw: (b, 0, hw)),
                # Weights / biases: resident (index_map ignores both grid axes).
                pl.BlockSpec((C, Cr), lambda b, hw: (0, 0)),
                pl.BlockSpec((1, Cr), lambda b, hw: (0, 0)),
                pl.BlockSpec((Cr, C), lambda b, hw: (0, 0)),
                pl.BlockSpec((1, C), lambda b, hw: (0, 0)),
            ],
            # Output block index constant across the hw axis -> accumulator-style
            # residency; only written on the final spatial tile.
            out_specs=pl.BlockSpec((1, 1, C), lambda b, hw: (b, 0, 0)),
            scratch_shapes=[pltpu.VMEM((1, C), jnp.float32)],
        ),
        compiler_params=pltpu.CompilerParams(
            dimension_semantics=("parallel", "arbitrary")),
    )(x, w1, b1_2d, w2, b2_2d)

    # Match PyTorch output shape (B, C, 1, 1).
    return out.reshape(B, C, 1, 1)


def _reference(x_nchw, w1, b1, w2, b2):
    # Pure-JAX reference for correctness checking.
    pooled = jnp.mean(x_nchw.astype(jnp.float32), axis=(2, 3))     # (B, C)
    h = jnp.maximum(pooled @ w1 + b1, 0.0)
    s = jax.nn.sigmoid(h @ w2 + b2)
    return s.reshape(x_nchw.shape[0], x_nchw.shape[1], 1, 1)


if __name__ == "__main__":
    # Small shapes consistent with SE(in_channel=4, ratio=2).
    B, C, H, W = 2, 4, 16, 16
    ratio = 2
    Cr = C // ratio

    key = jax.random.PRNGKey(0)
    kx, k1, kb1, k2, kb2 = jax.random.split(key, 5)

    x = jax.random.normal(kx, (B, C, H, W), dtype=jnp.float32)
    # PyTorch Conv2d weights are (out, in, 1, 1); we store the equivalent
    # (in, out) matmul matrices directly.
    w1 = jax.random.normal(k1, (C, Cr), dtype=jnp.float32) * 0.5    # compress
    b1 = jax.random.normal(kb1, (Cr,), dtype=jnp.float32) * 0.1
    w2 = jax.random.normal(k2, (Cr, C), dtype=jnp.float32) * 0.5    # excitation
    b2 = jax.random.normal(kb2, (C,), dtype=jnp.float32) * 0.1

    # tile_hw=128 -> 2 spatial tiles per image: exercises the tiled-reduction /
    # accumulator path (auto-selection would pick the full 256 here).
    out = se_forward(x, w1, b1, w2, b2, tile_hw=128)
    out = jax.block_until_ready(out)

    ref = _reference(x, w1, b1, w2, b2)
    assert out.shape == (B, C, 1, 1), out.shape
    assert jnp.allclose(out, ref, atol=1e-5, rtol=1e-5), (
        f"max err {jnp.max(jnp.abs(out - ref))}")

    print("KERNEL_OK")
</pallas_src>

<mosaic_0001>
module attributes {stable_mosaic.version = 11 : i64} {
  func.func @_se_kernel(%arg0: i32, %arg1: i32, %arg2: memref<1x4x128xf32, #tpu.memory_space<vmem>>, %arg3: memref<4x2xf32, #tpu.memory_space<vmem>>, %arg4: memref<1x2xf32, #tpu.memory_space<vmem>>, %arg5: memref<2x4xf32, #tpu.memory_space<vmem>>, %arg6: memref<1x4xf32, #tpu.memory_space<vmem>>, %arg7: memref<1x1x4xf32, #tpu.memory_space<vmem>>, %arg8: memref<1x4xf32, #tpu.memory_space<vmem>>) attributes {dimension_semantics = [#tpu.dimension_semantics<parallel>, #tpu.dimension_semantics<arbitrary>], iteration_bounds = array<i64: 2, 2>, scalar_prefetch = 0 : i64, scratch_operands = 1 : i64, tpu.core_type = #tpu.core_type<tc>, window_params = [{transform_indices = @transform_0, window_bounds = array<i64: 1, 4, 128>}, {pipeline_mode = #tpu.pipeline_mode<synchronous>, transform_indices = @transform_1, window_bounds = array<i64: 4, 2>}, {pipeline_mode = #tpu.pipeline_mode<synchronous>, transform_indices = @transform_2, window_bounds = array<i64: 1, 2>}, {pipeline_mode = #tpu.pipeline_mode<synchronous>, transform_indices = @transform_3, window_bounds = array<i64: 2, 4>}, {pipeline_mode = #tpu.pipeline_mode<synchronous>, transform_indices = @transform_4, window_bounds = array<i64: 1, 4>}, {transform_indices = @transform_5, window_bounds = array<i64: 1, 1, 4>}]} {
    %c0_i32 = arith.constant 0 : i32
    %0 = arith.cmpi eq, %arg1, %c0_i32 : i32
    %1 = arith.extui %0 : i1 to i32
    %c0_i32_0 = arith.constant 0 : i32
    %2 = arith.cmpi ne, %1, %c0_i32_0 : i32
    scf.if %2 {
      %cst_8 = arith.constant 0.000000e+00 : f32
      %11 = vector.broadcast %cst_8 : f32 to vector<1x4xf32>
      %c0_9 = arith.constant 0 : index
      %c0_10 = arith.constant 0 : index
      %12 = vector.load %arg8[%c0_9, %c0_10] : memref<1x4xf32, #tpu.memory_space<vmem>>, vector<1x4xf32>
      tpu.vector_store %arg8[%c0_9, %c0_10], %11 {strides = array<i32>} : memref<1x4xf32, #tpu.memory_space<vmem>>, vector<1x4xf32>,
    } else {
    }
    %c0 = arith.constant 0 : index
    %c0_1 = arith.constant 0 : index
    %c0_2 = arith.constant 0 : index
    %3 = vector.load %arg2[%c0, %c0_1, %c0_2] : memref<1x4x128xf32, #tpu.memory_space<vmem>>, vector<1x4x128xf32>
    %c0_3 = arith.constant 0 : index
    %c0_4 = arith.constant 0 : index
    %4 = vector.load %arg8[%c0_3, %c0_4] : memref<1x4xf32, #tpu.memory_space<vmem>>, vector<1x4xf32>
    %cst = arith.constant dense<0.000000e+00> : vector<1x4xf32>
    %5 = vector.multi_reduction <add>, %3, %cst [2] : vector<1x4x128xf32> to vector<1x4xf32>
    %6 = arith.addf %4, %5 : vector<1x4xf32>
    %c0_5 = arith.constant 0 : index
    %c0_6 = arith.constant 0 : index
    %7 = vector.load %arg8[%c0_5, %c0_6] : memref<1x4xf32, #tpu.memory_space<vmem>>, vector<1x4xf32>
    tpu.vector_store %arg8[%c0_5, %c0_6], %6 {strides = array<i32>} : memref<1x4xf32, #tpu.memory_space<vmem>>, vector<1x4xf32>,
    %c1_i32 = arith.constant 1 : i32
    %8 = arith.cmpi eq, %arg1, %c1_i32 : i32
    %9 = arith.extui %8 : i1 to i32
    %c0_i32_7 = arith.constant 0 : i32
    %10 = arith.cmpi ne, %9, %c0_i32_7 : i32
    scf.if %10 {
      %c0_8 = arith.constant 0 : index
      %c0_9 = arith.constant 0 : index
      %11 = vector.load %arg8[%c0_8, %c0_9] : memref<1x4xf32, #tpu.memory_space<vmem>>, vector<1x4xf32>
      %cst_10 = arith.constant 3.906250e-03 : f32
      %12 = vector.broadcast %cst_10 : f32 to vector<1x4xf32>
      %13 = arith.mulf %11, %12 : vector<1x4xf32>
      %c0_11 = arith.constant 0 : index
      %c0_12 = arith.constant 0 : index
      %14 = vector.load %arg3[%c0_11, %c0_12] : memref<4x2xf32, #tpu.memory_space<vmem>>, vector<4x2xf32>
      %cst_13 = arith.constant dense<0.000000e+00> : vector<1x2xf32>
      %15 = tpu.matmul %13, %14, %cst_13 {dimension_numbers = #tpu.dot_dimension_numbers<[1], [0], [0], [1], [0, 0, 1, 1], [], []>} : vector<1x4xf32>, vector<4x2xf32>, vector<1x2xf32> -> vector<1x2xf32>
      %c0_14 = arith.constant 0 : index
      %c0_15 = arith.constant 0 : index
      %16 = vector.load %arg4[%c0_14, %c0_15] : memref<1x2xf32, #tpu.memory_space<vmem>>, vector<1x2xf32>
      %17 = arith.addf %15, %16 : vector<1x2xf32>
      %cst_16 = arith.constant 0.000000e+00 : f32
      %18 = vector.broadcast %cst_16 : f32 to vector<1x2xf32>
      %19 = arith.maximumf %17, %18 : vector<1x2xf32>
      %c0_17 = arith.constant 0 : index
      %c0_18 = arith.constant 0 : index
      %20 = vector.load %arg5[%c0_17, %c0_18] : memref<2x4xf32, #tpu.memory_space<vmem>>, vector<2x4xf32>
      %cst_19 = arith.constant dense<0.000000e+00> : vector<1x4xf32>
      %21 = tpu.matmul %19, %20, %cst_19 {dimension_numbers = #tpu.dot_dimension_numbers<[1], [0], [0], [1], [0, 0, 1, 1], [], []>} : vector<1x2xf32>, vector<2x4xf32>, vector<1x4xf32> -> vector<1x4xf32>
      %c0_20 = arith.constant 0 : index
      %c0_21 = arith.constant 0 : index
      %22 = vector.load %arg6[%c0_20, %c0_21] : memref<1x4xf32, #tpu.memory_space<vmem>>, vector<1x4xf32>
      %23 = arith.addf %21, %22 : vector<1x4xf32>
      %24 = arith.negf %23 : vector<1x4xf32>
      %25 = math.exp %24 : vector<1x4xf32>
      %cst_22 = arith.constant 1.000000e+00 : f32
      %26 = vector.broadcast %cst_22 : f32 to vector<1x4xf32>
      %27 = arith.addf %26, %25 : vector<1x4xf32>
      %28 = arith.divf %26, %27 : vector<1x4xf32>
      %29 = vector.shape_cast %28 : vector<1x4xf32> to vector<1x1x4xf32>
      %c0_23 = arith.constant 0 : index
      %c0_24 = arith.constant 0 : index
      %c0_25 = arith.constant 0 : index
      %30 = vector.load %arg7[%c0_23, %c0_24, %c0_25] : memref<1x1x4xf32, #tpu.memory_space<vmem>>, vector<1x1x4xf32>
      tpu.vector_store %arg7[%c0_23, %c0_24, %c0_25], %29 {strides = array<i32>} : memref<1x1x4xf32, #tpu.memory_space<vmem>>, vector<1x1x4xf32>,
    } else {
    }
    return
  }
  func.func @transform_0(%arg0: i32, %arg1: i32) -> (i32, i32, i32) {
    %c0_i32 = arith.constant 0 : i32
    %c0_i32_0 = arith.constant 0 : i32
    return %arg0, %c0_i32, %arg1 : i32, i32, i32
  }
  func.func @transform_1(%arg0: i32, %arg1: i32) -> (i32, i32) {
    %c0_i32 = arith.constant 0 : i32
    %c0_i32_0 = arith.constant 0 : i32
    %c0_i32_1 = arith.constant 0 : i32
    return %c0_i32, %c0_i32_0 : i32, i32
  }
  func.func @transform_2(%arg0: i32, %arg1: i32) -> (i32, i32) {
    %c0_i32 = arith.constant 0 : i32
    %c0_i32_0 = arith.constant 0 : i32
    %c0_i32_1 = arith.constant 0 : i32
    return %c0_i32, %c0_i32_0 : i32, i32
  }
  func.func @transform_3(%arg0: i32, %arg1: i32) -> (i32, i32) {
    %c0_i32 = arith.constant 0 : i32
    %c0_i32_0 = arith.constant 0 : i32
    %c0_i32_1 = arith.constant 0 : i32
    return %c0_i32, %c0_i32_0 : i32, i32
  }
  func.func @transform_4(%arg0: i32, %arg1: i32) -> (i32, i32) {
    %c0_i32 = arith.constant 0 : i32
    %c0_i32_0 = arith.constant 0 : i32
    %c0_i32_1 = arith.constant 0 : i32
    return %c0_i32, %c0_i32_0 : i32, i32
  }
  func.func @transform_5(%arg0: i32, %arg1: i32) -> (i32, i32, i32) {
    %c0_i32 = arith.constant 0 : i32
    %c0_i32_0 = arith.constant 0 : i32
    %c0_i32_1 = arith.constant 0 : i32
    return %arg0, %c0_i32, %c0_i32_0 : i32, i32, i32
  }
}

</mosaic_0001>

<llo_original>
// kernel: tpu_custom_call.1
$region0: #{tpu_custom_call.1}
  #allocation0 [shape = 'u32[]', space=smem, size = 0x4, offset = 0x4, fixed_abs, tag = 'smem constant byte address 0x4 - core index']
  #allocation1 [shape = 'u32[144,128]{1,0:T(1,128)}', space=vmem, size = 0x12000, scoped, tag = 'internal scratch']
  #allocation2 [shape = 'f32[1,4]{1,0:T(1,128)}', space=vmem, size = 0x200, scoped, tag = 'scratch operand']
  %s0 = inlined_call_operand.hbm [shape: f32[2,4,256], index: 0, kind: input, shape index: {}]
  %s1 = inlined_call_operand.vmem [shape: f32[4,2], index: 1, kind: input, shape index: {}]
  %s2 = inlined_call_operand.vmem [shape: f32[1,2], index: 2, kind: input, shape index: {}]
  %s3 = inlined_call_operand.vmem [shape: f32[2,4], index: 3, kind: input, shape index: {}]
  %s4 = inlined_call_operand.vmem [shape: f32[1,4], index: 4, kind: input, shape index: {}]
  %s5 = inlined_call_operand.hbm [shape: f32[2,1,4], index: 5, kind: output, shape index: {}]
  %s6 = sld [smem:[#allocation0]]
  $region65: #{tpu_custom_call.1} parent=0
    _
  %s8 = ssub.s32 1, %s6
  %s9 = scalar_select 0, %s8, %s6
  $region1: #{tpu_custom_call.1} parent=0
    #allocation3 [shape = 'u8[4096]{0}', space=vmem, size = 0x1000, scoped, tag = 'input window, operand 0']
    #allocation4 [shape = 's32[2]{0}', space=sflag, size = 0x8, scoped, tag = 'scoped memory for tpu_custom_call.1']
    #allocation5 [shape = 's32[2]{0}', space=sflag, size = 0x8, scoped, tag = 'scoped memory for tpu_custom_call.1']
    #allocation6 [shape = 'u8[1024]{0}', space=vmem, size = 0x400, scoped, tag = 'output window, operand 0']
    %10 = vsyncpa [#allocation4], 0
    %s11 = scalar_lea.sflag [#allocation4], 1
    %12 = vsyncpa %s11, 0
    %13 = vsyncpa [#allocation5], 0
    %s14 = scalar_lea.sflag [#allocation5], 1
    %15 = vsyncpa %s14, 0
    loop: start=0, step=1, limit=6
    $region2: #{tpu_custom_call.1} parent=1 // loop_pre_header
      _
    $region3: #{tpu_custom_call.1} parent=1 // loop_header
      %s17 = sphi 0, %s21
      %p18 = scmp.ge.s32.totalorder %s17, 6
      %s24 = sphi 0, %s36
      %s25 = sphi 0, %s32
      %s26 = sphi 0, %s24
      %s27 = sphi 0, %s25
      %s28 = sphi 0, %s26
      %s29 = sphi 0, %s27
      %s41 = sphi 0, %s43
      %s44 = sphi 0, %s41
      %s45 = sphi 0, %s44
      %s61 = sphi 0, %s45
      %s65 = sphi 0, %s65
      %s67 = sphi 0, %s65
      %s68 = sphi 0, %s67
      %s82 = sphi 0, %s68
      %s86 = sphi 0, %s86
      %s88 = sphi 0, %s86
      %s89 = sphi 0, %s88
      %s103 = sphi 0, %s89
      %s107 = sphi 0, %s107
      %s109 = sphi 0, %s107
      %s110 = sphi 0, %s109
      %s124 = sphi 0, %s110
      %s128 = sphi 0, %s128
      %s130 = sphi 0, %s128
      %s131 = sphi 0, %s130
      %s145 = sphi 0, %s131
      %s151 = sphi 0, %s153
      %s154 = sphi 0, %s151
      %s155 = sphi 0, %s154
      %s171 = sphi 0, %s155
    $region4: #{tpu_custom_call.1} parent=1 // loop_header_branch
      %20 = sbr.rel (%p18) target = $region8
    $region5: #{tpu_custom_call.1} parent=1 // loop_body
      %s22 = ssub.s32 %s17, 1
      %s23 = ssub.s32 %s17, 2
      %s30 = sadd.s32 1, %s25
      %p31 = scmp.ge.s32.totalorder %s30, 2
      %s32 = scalar_select %p31, 0, %s30
      %s33 = sadd.s32 1, %s24
      %s34 = scalar_select %p31, %s33, %s24
      %p35 = scmp.ge.s32.totalorder %s34, 2
      %s36 = scalar_select %p35, 0, %s34
      %s37 = ssub.s32 %s24, %s36
      %s38 = ssub.s32 %s25, %s32
      %s39 = sor.u32 %s37, %s38
      %p40 = scmp.eq.s32.totalorder %s39, 0
      %s42 = sadd.s32 %s41, 1
      %s43 = scalar_select %p40, %s41, %s42
      %p46 = pneg %p40
      %p47 = scmp.eq.s32.totalorder %s17, 3
      %p48 = por %p46, %p47
      %p49 = scmp.ne.s32.totalorder %s41, %s44
      %p50 = scmp.eq.s32.totalorder %s17, 0
      %p51 = por %p49, %p50
      %p52 = scmp.ne.s32.totalorder %s41, %s44
      %p53 = scmp.eq.s32.totalorder %s22, 3
      %p54 = por %p52, %p53
      %p55 = scmp.ne.s32.totalorder %s44, %s45
      %p56 = scmp.eq.s32.totalorder %s22, 0
      %p57 = por %p55, %p56
      %p58 = scmp.ne.s32.totalorder %s44, %s45
      %p59 = scmp.eq.s32.totalorder %s23, 3
      %p60 = por %p58, %p59
      %p62 = scmp.ne.s32.totalorder %s45, %s61
      %p63 = scmp.eq.s32.totalorder %s23, 0
      %p64 = por %p62, %p63
      %s66 = sadd.s32 %s65, 1
      %p69 = scmp.eq.s32.totalorder %s17, 3
      %p70 = scmp.ne.s32.totalorder %s65, %s67
      %p71 = scmp.eq.s32.totalorder %s17, 0
      %p72 = por %p70, %p71
      %p73 = scmp.ne.s32.totalorder %s65, %s67
      %p74 = scmp.eq.s32.totalorder %s22, 3
      %p75 = por %p73, %p74
      %p76 = scmp.ne.s32.totalorder %s67, %s68
      %p77 = scmp.eq.s32.totalorder %s22, 0
      %p78 = por %p76, %p77
      %p79 = scmp.ne.s32.totalorder %s67, %s68
      %p80 = scmp.eq.s32.totalorder %s23, 3
      %p81 = por %p79, %p80
      %p83 = scmp.ne.s32.totalorder %s68, %s82
      %p84 = scmp.eq.s32.totalorder %s23, 0
      %p85 = por %p83, %p84
      %s87 = sadd.s32 %s86, 1
      %p90 = scmp.eq.s32.totalorder %s17, 3
      %p91 = scmp.ne.s32.totalorder %s86, %s88
      %p92 = scmp.eq.s32.totalorder %s17, 0
      %p93 = por %p91, %p92
      %p94 = scmp.ne.s32.totalorder %s86, %s88
      %p95 = scmp.eq.s32.totalorder %s22, 3
      %p96 = por %p94, %p95
      %p97 = scmp.ne.s32.totalorder %s88, %s89
      %p98 = scmp.eq.s32.totalorder %s22, 0
      %p99 = por %p97, %p98
      %p100 = scmp.ne.s32.totalorder %s88, %s89
      %p101 = scmp.eq.s32.totalorder %s23, 3
      %p102 = por %p100, %p101
      %p104 = scmp.ne.s32.totalorder %s89, %s103
      %p105 = scmp.eq.s32.totalorder %s23, 0
      %p106 = por %p104, %p105
      %s108 = sadd.s32 %s107, 1
      %p111 = scmp.eq.s32.totalorder %s17, 3
      %p112 = scmp.ne.s32.totalorder %s107, %s109
      %p113 = scmp.eq.s32.totalorder %s17, 0
      %p114 = por %p112, %p113
      %p115 = scmp.ne.s32.totalorder %s107, %s109
      %p116 = scmp.eq.s32.totalorder %s22, 3
      %p117 = por %p115, %p116
      %p118 = scmp.ne.s32.totalorder %s109, %s110
      %p119 = scmp.eq.s32.totalorder %s22, 0
      %p120 = por %p118, %p119
      %p121 = scmp.ne.s32.totalorder %s109, %s110
      %p122 = scmp.eq.s32.totalorder %s23, 3
      %p123 = por %p121, %p122
      %p125 = scmp.ne.s32.totalorder %s110, %s124
      %p126 = scmp.eq.s32.totalorder %s23, 0
      %p127 = por %p125, %p126
      %s129 = sadd.s32 %s128, 1
      %p132 = scmp.eq.s32.totalorder %s17, 3
      %p133 = scmp.ne.s32.totalorder %s128, %s130
      %p134 = scmp.eq.s32.totalorder %s17, 0
      %p135 = por %p133, %p134
      %p136 = scmp.ne.s32.totalorder %s128, %s130
      %p137 = scmp.eq.s32.totalorder %s22, 3
      %p138 = por %p136, %p137
      %p139 = scmp.ne.s32.totalorder %s130, %s131
      %p140 = scmp.eq.s32.totalorder %s22, 0
      %p141 = por %p139, %p140
      %p142 = scmp.ne.s32.totalorder %s130, %s131
      %p143 = scmp.eq.s32.totalorder %s23, 3
      %p144 = por %p142, %p143
      %p146 = scmp.ne.s32.totalorder %s131, %s145
      %p147 = scmp.eq.s32.totalorder %s23, 0
      %p148 = por %p146, %p147
      %s149 = ssub.s32 %s24, %s36
      %p150 = scmp.eq.s32.totalorder %s149, 0
      %s152 = sadd.s32 %s151, 1
      %s153 = scalar_select %p150, %s151, %s152
      %p156 = pneg %p150
      %p157 = scmp.eq.s32.totalorder %s17, 3
      %p158 = por %p156, %p157
      %p159 = scmp.ne.s32.totalorder %s151, %s154
      %p160 = scmp.eq.s32.totalorder %s17, 0
      %p161 = por %p159, %p160
      %p162 = scmp.ne.s32.totalorder %s151, %s154
      %p163 = scmp.eq.s32.totalorder %s22, 3
      %p164 = por %p162, %p163
      %p165 = scmp.ne.s32.totalorder %s154, %s155
      %p166 = scmp.eq.s32.totalorder %s22, 0
      %p167 = por %p165, %p166
      %p168 = scmp.ne.s32.totalorder %s154, %s155
      %p169 = scmp.eq.s32.totalorder %s23, 3
      %p170 = por %p168, %p169
      %p172 = scmp.ne.s32.totalorder %s155, %s171
      %p173 = scmp.eq.s32.totalorder %s23, 0
      %p174 = por %p172, %p173
      %p175 = scmp.le.s32.totalorder 1, %s17
      %p176 = scmp.lt.s32.totalorder %s17, 5
      %p177 = pnand %p175, %p176
      %p178 = pneg %p177
      // Predicated region
      $region9: #{tpu_custom_call.1} parent=5 // pred_check
        _
      $region10: #{tpu_custom_call.1} parent=5 // pred_check_branch
        %180 = sbr.rel (%p177) target = $region12
      $region11: #{tpu_custom_call.1} parent=5 // pred_region
        %s181 = ssub.s32 %s17, 1
        // Predicated region
        $region13: #{tpu_custom_call.1} parent=11 // pred_check
          %p182 = pneg %p78
        $region14: #{tpu_custom_call.1} parent=11 // pred_check_branch
          %184 = sbr.rel (%p182) target = $region16
        $region15: #{tpu_custom_call.1} parent=11 // pred_region
          _
        $region16: #{tpu_custom_call.1} parent=11 // pred_fallthru
          _
        // Predicated region
        $region17: #{tpu_custom_call.1} parent=11 // pred_check
          %p185 = pneg %p99
        $region18: #{tpu_custom_call.1} parent=11 // pred_check_branch
          %187 = sbr.rel (%p185) target = $region20
        $region19: #{tpu_custom_call.1} parent=11 // pred_region
          _
        $region20: #{tpu_custom_call.1} parent=11 // pred_fallthru
          _
        // Predicated region
        $region21: #{tpu_custom_call.1} parent=11 // pred_check
          %p188 = pneg %p120
        $region22: #{tpu_custom_call.1} parent=11 // pred_check_branch
          %190 = sbr.rel (%p188) target = $region24
        $region23: #{tpu_custom_call.1} parent=11 // pred_region
          _
        $region24: #{tpu_custom_call.1} parent=11 // pred_fallthru
          _
        // Predicated region
        $region25: #{tpu_custom_call.1} parent=11 // pred_check
          %p191 = pneg %p141
        $region26: #{tpu_custom_call.1} parent=11 // pred_check_branch
          %193 = sbr.rel (%p191) target = $region28
        $region27: #{tpu_custom_call.1} parent=11 // pred_region
          _
        $region28: #{tpu_custom_call.1} parent=11 // pred_fallthru
          _
      $region12: #{tpu_custom_call.1} parent=5 // pred_fallthru
        _
      %p194 = scmp.lt.s32.totalorder %s17, 4
      // Predicated region
      $region29: #{tpu_custom_call.1} parent=5 // pred_check
        %p195 = pneg %p194
      $region30: #{tpu_custom_call.1} parent=5 // pred_check_branch
        %197 = sbr.rel (%p195) target = $region32
      $region31: #{tpu_custom_call.1} parent=5 // pred_region
        // Predicated region
        $region33: #{tpu_custom_call.1} parent=31 // pred_check
          %p198 = pneg %p51
        $region34: #{tpu_custom_call.1} parent=31 // pred_check_branch
          %200 = sbr.rel (%p198) target = $region36
        $region35: #{tpu_custom_call.1} parent=31 // pred_region
          %s201 = sand.u32 %s41, 1
          %s202 = scalar_lea.sflag [#allocation4], %s201
          %s203 = sand.u32 %s41, 1
          %s204 = smul.addr %s203, 4
          %s205 = scalar_lea.vmem [#allocation3], %s204
          %s207 = ssub.s32 64, 64
          %208 = vsyncadd %s202, %s207
          %s209 = smul.addr %s24, 2
          %s210 = sadd.s32 %s25, %s209
          %s211 = smul.addr %s210, 64
          %s212 = scalar_lea.hbm %s0, %s211
          %s214 = sshll.u32 %s205, 4
          %s215 = int_to_ptr.vmem [resolvable:$true] %s214
          %217 = dma.hbm_to_vmem [thread:$0]  %s212, 64, %s215, %s202
        $region36: #{tpu_custom_call.1} parent=31 // pred_fallthru
          _
      $region32: #{tpu_custom_call.1} parent=5 // pred_fallthru
        _
      %p218 = scmp.le.s32.totalorder 1, %s17
      %p219 = scmp.lt.s32.totalorder %s17, 5
      %p220 = pnand %p218, %p219
      %p221 = pneg %p220
      // Predicated region
      $region37: #{tpu_custom_call.1} parent=5 // pred_check
        _
      $region38: #{tpu_custom_call.1} parent=5 // pred_check_branch
        %223 = sbr.rel (%p220) target = $region40
      $region39: #{tpu_custom_call.1} parent=5 // pred_region
        %s224 = ssub.s32 %s17, 1
        %s225 = sand.u32 %s44, 1
        %s226 = scalar_lea.sflag [#allocation4], %s225
        %s227 = sand.u32 %s44, 1
        %s228 = smul.addr %s227, 4
        %s229 = scalar_lea.vmem [#allocation3], %s228
        // Predicated region
        $region41: #{tpu_custom_call.1} parent=39 // pred_check
          %p230 = pneg %p57
        $region42: #{tpu_custom_call.1} parent=39 // pred_check_branch
          %232 = sbr.rel (%p230) target = $region44
        $region43: #{tpu_custom_call.1} parent=39 // pred_region
          %233 = dma.done %s226, 64
        $region44: #{tpu_custom_call.1} parent=39 // pred_fallthru
          _
        %s234 = sand.u32 %s44, 1
        %s235 = scalar_lea.sflag [#allocation4], %s234
        %s236 = sand.u32 %s44, 1
        %s237 = smul.addr %s236, 4
        %s238 = scalar_lea.vmem [#allocation3], %s237
        %p239 = pneg %p57
        %p240 = pneg %p54
        %p241 = pneg %p78
        %p242 = pneg %p75
        %p243 = pneg %p99
        %p244 = pneg %p96
        %p245 = pneg %p120
        %p246 = pneg %p117
        %p247 = pneg %p141
        %p248 = pneg %p138
        %p249 = pneg %p167
        %p250 = pneg %p164
        %s251 = sand.u32 %s154, 1
        %s252 = scalar_lea.sflag [#allocation5], %s251
        %s253 = sand.u32 %s154, 1
        %s254 = scalar_lea.vmem [#allocation6], %s253
        %p255 = scmp.eq.s32.totalorder %s27, 0
        // Predicated region
        $region45: #{tpu_custom_call.1} parent=39 // pred_check
          %p256 = pneg %p255
        $region46: #{tpu_custom_call.1} parent=39 // pred_check_branch
          %258 = sbr.rel (%p256) target = $region48
        $region47: #{tpu_custom_call.1} parent=39 // pred_region
          %vm259 = vcmask 24576
          %260 = vst.msk [vmem:[#allocation2] sm:$0x1] %vm259, 0.0
        $region48: #{tpu_custom_call.1} parent=39 // pred_fallthru
          _
        %v261 = vld [vmem:[%s229] sm:$0xf]
        %v262 = vld [vmem:[#allocation2] sm:$0x1]
        %vm263 = vcmask 1043456
        %v264 = vsel %vm263, %v261, 0.0
        %265 = vadd.xlane.f32.xlu0 %v264
        %v266 = vpop.xlane.xlu0 %265
        %v268 = vlaneseq
        %v269 = vshrl.u32 %v268, 7
        %v270 = vsub.s32 0, %v269
        %v271 = vrot.slane %v266, %v270
        %v272 = vlaneseq
        %v273 = vshrl.u32 %v272, 7
        %v274 = vsub.s32 1, %v273
        %v275 = vrot.slane %v266, %v274
        %v276 = vlaneseq
        %v277 = vshrl.u32 %v276, 7
        %v278 = vsub.s32 2, %v277
        %v279 = vrot.slane %v266, %v278
        %v280 = vlaneseq
        %v281 = vshrl.u32 %v280, 7
        %v282 = vsub.s32 3, %v281
        %v283 = vrot.slane %v266, %v282
        %v284 = vcombine.low %v271, %v275
        %v285 = vcombine.low %v279, %v283
        %v287 = vunpack.c.l.s4 1966171168
        %v288 = vunpack.c.0.s8 %v287
        %v289 = vlaneseq
        %v290 = vshrl.u32 %v289, 7
        %v291 = vsub.s32 %v288, %v290
        %v292 = vrot.slane %v284, %v291
        %v294 = vunpack.c.l.s4 1966171168
        %v295 = vunpack.c.0.s8 %v294
        %v296 = vlaneseq
        %v297 = vshrl.u32 %v296, 7
        %v298 = vsub.s32 %v295, %v297
        %v299 = vrot.slane %v285, %v298
        %v300 = vcombine.low %v292, %v299
        %v302 = vunpack.c.l.s4 1966171168
        %v303 = vunpack.c.0.s8 %v302
        %v304 = vlaneseq
        %v305 = vshrl.u32 %v304, 7
        %v306 = vsub.s32 %v303, %v305
        %v307 = vrot.slane %v300, %v306
        %308 = vset.pattern.permute.xlu0 0
        %309 = vperm.xlu0 %308, %v307
        %v310 = vpop.permute.xlu0 %309
        %v311 = vlaneseq
        %v312 = vand.u32 %v311, 127
        %v313 = vlaneseq
        %v314 = vshrl.u32 %v313, 7
        %v315 = vsub.s32 %v312, %v314
        %v316 = vrot.slane %v310, %v315
        %v318 = vunpack.c.l.s4 1966171168
        %v319 = vunpack.c.0.s8 %v318
        %v320 = vlaneseq
        %v321 = vshrl.u32 %v320, 7
        %v322 = vsub.s32 %v319, %v321
        %v323 = vrot.slane %v316, %v322
        %v325 = vunpack.c.l.s4 1966171168
        %v326 = vunpack.c.0.s8 %v325
        %v327 = vlaneseq
        %v328 = vshrl.u32 %v327, 7
        %v329 = vsub.s32 %v326, %v328
        %v330 = vrot.slane %v323, %v329
        %v332 = vadd.f32 %v262, %v330
        %vm333 = vcmask 24576
        %334 = vst.msk [vmem:[#allocation2] sm:$0x1] %vm333, %v332
        %p335 = scmp.eq.s32.totalorder %s27, 1
        // Predicated region
        $region49: #{tpu_custom_call.1} parent=39 // pred_check
          %p336 = pneg %p335
        $region50: #{tpu_custom_call.1} parent=39 // pred_check_branch
          %338 = sbr.rel (%p336) target = $region52
        $region51: #{tpu_custom_call.1} parent=39 // pred_region
          %v339 = vld [vmem:[#allocation2] sm:$0x1]
          %v340 = vmul.f32 %v339, 0.00390625
          %v341 = vld [vmem:[%s1] sm:$0xf]
          %v342 = vld [vmem:[%s2] sm:$0x1]
          %vm343 = vcmask 31744
          %v345 = vsel %vm343, %v340, 0
          %v348 = vsel %vm263, %v341, 0
          %350 = vmatprep.subr.mxu0 0.0
          %351 = vmatpush1.msra.mxu0 %v348
          %352 = vmatprep.subr.mxu0 0.0
          %353 = vmatpush1.msra.mxu0 0.0
          %354 = vmatprep.subr.mxu0 0.0
          %355 = vmatpush1.msra.mxu0 0.0
          %356 = vmatprep.subr.mxu0 0.0
          %357 = vmatpush1.msra.mxu0 0.0
          %358 = vmatprep.subr.mxu0 0.0
          %359 = vmatpush1.msra.mxu0 0.0
          %360 = vmatprep.subr.mxu0 0.0
          %361 = vmatpush1.msra.mxu0 0.0
          %362 = vmatprep.subr.mxu0 0.0
          %363 = vmatpush1.msra.mxu0 0.0
          %364 = vmatprep.subr.mxu0 0.0
          %365 = vmatpush1.msra.mxu0 0.0
          %366 = vmatprep.subr.mxu0 0.0
          %367 = vmatpush1.msra.mxu0 0.0
          %368 = vmatprep.subr.mxu0 0.0
          %369 = vmatpush1.msra.mxu0 0.0
          %370 = vmatprep.subr.mxu0 0.0
          %371 = vmatpush1.msra.mxu0 0.0
          %372 = vmatprep.subr.mxu0 0.0
          %373 = vmatpush1.msra.mxu0 0.0
          %374 = vmatprep.subr.mxu0 0.0
          %375 = vmatpush1.msra.mxu0 0.0
          %376 = vmatprep.subr.mxu0 0.0
          %377 = vmatpush1.msra.mxu0 0.0
          %378 = vmatprep.subr.mxu0 0.0
          %379 = vmatpush1.msra.mxu0 0.0
          %380 = vmatprep.subr.mxu0 0.0
          %381 = vmatpush1.msra.mxu0 0.0
          %382 = vmatprep.subr.mxu0 0.0
          %383 = vmatpush1.msra.mxu0 0.0
          %384 = vmatprep.subr.mxu0 0.0
          %385 = vmatpush1.msra.mxu0 0.0
          %386 = vmatprep.subr.mxu0 0.0
          %387 = vmatpush1.msra.mxu0 0.0
          %388 = vmatprep.subr.mxu0 0.0
          %389 = vmatpush1.msra.mxu0 0.0
          %390 = vmatprep.subr.mxu0 0.0
          %391 = vmatpush1.msra.mxu0 0.0
          %392 = vmatprep.subr.mxu0 0.0
          %393 = vmatpush1.msra.mxu0 0.0
          %394 = vmatprep.subr.mxu0 0.0
          %395 = vmatpush1.msra.mxu0 0.0
          %396 = vmatprep.subr.mxu0 0.0
          %397 = vmatpush1.msra.mxu0 0.0
          %398 = vmatprep.subr.mxu0 0.0
          %399 = vmatpush1.msra.mxu0 0.0
          %400 = vmatprep.subr.mxu0 0.0
          %401 = vmatpush1.msra.mxu0 0.0
          %402 = vmatprep.subr.mxu0 0.0
          %403 = vmatpush1.msra.mxu0 0.0
          %404 = vmatprep.subr.mxu0 0.0
          %405 = vmatpush1.msra.mxu0 0.0
          %406 = vmatprep.subr.mxu0 0.0
          %407 = vmatpush1.msra.mxu0 0.0
          %408 = vmatprep.subr.mxu0 0.0
          %409 = vmatpush1.msra.mxu0 0.0
          %410 = vmatprep.subr.mxu0 0.0
          %411 = vmatpush1.msra.mxu0 0.0
          %412 = vmatprep.subr.mxu0 0.0
          %413 = vmatpush1.msra.mxu0 0.0
          %414 = vmatprep.mubr.f32.mxu0 0.0
          %415 = vmatmul.mubr.f32.gmra.mrb[0].mxu0 %v345
          %v416 = vpop.f32.mrb[0].mxu0
          %v417 = vadd.f32 %v342, %v416
          %v418 = vpop.f32.mrb[0].mxu0
          %419 = vdwg.mxu0
          %v420 = vmax.f32 %v417, 0.0
          %v421 = vld [vmem:[%s3] sm:$0x3]
          %v422 = vld [vmem:[%s4] sm:$0x1]
          %vm423 = vcmask 15360
          %v425 = vsel %vm423, %v420, 0
          %vm427 = vcmask 1041408
          %v429 = vsel %vm427, %v421, 0
          %431 = vmatprep.subr.mxu0 0.0
          %432 = vmatpush1.msra.mxu0 %v429
          %433 = vmatprep.subr.mxu0 0.0
          %434 = vmatpush1.msra.mxu0 0.0
          %435 = vmatprep.subr.mxu0 0.0
          %436 = vmatpush1.msra.mxu0 0.0
          %437 = vmatprep.subr.mxu0 0.0
          %438 = vmatpush1.msra.mxu0 0.0
          %439 = vmatprep.subr.mxu0 0.0
          %440 = vmatpush1.msra.mxu0 0.0
          %441 = vmatprep.subr.mxu0 0.0
          %442 = vmatpush1.msra.mxu0 0.0
          %443 = vmatprep.subr.mxu0 0.0
          %444 = vmatpush1.msra.mxu0 0.0
          %445 = vmatprep.subr.mxu0 0.0
          %446 = vmatpush1.msra.mxu0 0.0
          %447 = vmatprep.subr.mxu0 0.0
          %448 = vmatpush1.msra.mxu0 0.0
          %449 = vmatprep.subr.mxu0 0.0
          %450 = vmatpush1.msra.mxu0 0.0
          %451 = vmatprep.subr.mxu0 0.0
          %452 = vmatpush1.msra.mxu0 0.0
          %453 = vmatprep.subr.mxu0 0.0
          %454 = vmatpush1.msra.mxu0 0.0
          %455 = vmatprep.subr.mxu0 0.0
          %456 = vmatpush1.msra.mxu0 0.0
          %457 = vmatprep.subr.mxu0 0.0
          %458 = vmatpush1.msra.mxu0 0.0
          %459 = vmatprep.subr.mxu0 0.0
          %460 = vmatpush1.msra.mxu0 0.0
          %461 = vmatprep.subr.mxu0 0.0
          %462 = vmatpush1.msra.mxu0 0.0
          %463 = vmatprep.subr.mxu0 0.0
          %464 = vmatpush1.msra.mxu0 0.0
          %465 = vmatprep.subr.mxu0 0.0
          %466 = vmatpush1.msra.mxu0 0.0
          %467 = vmatprep.subr.mxu0 0.0
          %468 = vmatpush1.msra.mxu0 0.0
          %469 = vmatprep.subr.mxu0 0.0
          %470 = vmatpush1.msra.mxu0 0.0
          %471 = vmatprep.subr.mxu0 0.0
          %472 = vmatpush1.msra.mxu0 0.0
          %473 = vmatprep.subr.mxu0 0.0
          %474 = vmatpush1.msra.mxu0 0.0
          %475 = vmatprep.subr.mxu0 0.0
          %476 = vmatpush1.msra.mxu0 0.0
          %477 = vmatprep.subr.mxu0 0.0
          %478 = vmatpush1.msra.mxu0 0.0
          %479 = vmatprep.subr.mxu0 0.0
          %480 = vmatpush1.msra.mxu0 0.0
          %481 = vmatprep.subr.mxu0 0.0
          %482 = vmatpush1.msra.mxu0 0.0
          %483 = vmatprep.subr.mxu0 0.0
          %484 = vmatpush1.msra.mxu0 0.0
          %485 = vmatprep.subr.mxu0 0.0
          %486 = vmatpush1.msra.mxu0 0.0
          %487 = vmatprep.subr.mxu0 0.0
          %488 = vmatpush1.msra.mxu0 0.0
          %489 = vmatprep.subr.mxu0 0.0
          %490 = vmatpush1.msra.mxu0 0.0
          %491 = vmatprep.subr.mxu0 0.0
          %492 = vmatpush1.msra.mxu0 0.0
          %493 = vmatprep.subr.mxu0 0.0
          %494 = vmatpush1.msra.mxu0 0.0
          %495 = vmatprep.mubr.f32.mxu0 0.0
          %496 = vmatmul.mubr.f32.gmra.mrb[0].mxu0 %v425
          %v497 = vpop.f32.mrb[0].mxu0
          %v498 = vadd.f32 %v422, %v497
          %v499 = vpop.f32.mrb[0].mxu0
          %500 = vdwg.mxu0
          %v501 = vxor.u32 %v498, 2147483648
          %v502 = vmul.f32 %v501, 1.442695
          %v503 = vpow.pop %v502
          %v504 = vadd.f32 %v503, 1.0
          %v505 = vrcp.pop %v504
          %v506 = vmul.f32 1.0, %v505
          %507 = vst.msk [vmem:[%s254] sm:$0x1] %vm333, %v506
        $region52: #{tpu_custom_call.1} parent=39 // pred_fallthru
          _
        %s508 = sand.u32 %s154, 1
        %s509 = scalar_lea.sflag [#allocation5], %s508
        %s510 = sand.u32 %s154, 1
        %s511 = scalar_lea.vmem [#allocation6], %s510
        // Predicated region
        $region53: #{tpu_custom_call.1} parent=39 // pred_check
          %p512 = pneg %p164
        $region54: #{tpu_custom_call.1} parent=39 // pred_check_branch
          %514 = sbr.rel (%p512) target = $region56
        $region55: #{tpu_custom_call.1} parent=39 // pred_region
          %s516 = ssub.s32 16, 16
          %517 = vsyncadd %s509, %s516
          %s518 = smul.addr %s26, 16
          %s519 = scalar_lea.hbm %s5, %s518
          %s521 = sshll.u32 %s511, 4
          %s522 = int_to_ptr.vmem [resolvable:$true] %s521
          %524 = dma.vmem_to_hbm [thread:$0]  %s522, 16, %s519, %s509
        $region56: #{tpu_custom_call.1} parent=39 // pred_fallthru
          _
      $region40: #{tpu_custom_call.1} parent=5 // pred_fallthru
        _
      %p525 = scmp.le.s32.totalorder 2, %s17
      // Predicated region
      $region57: #{tpu_custom_call.1} parent=5 // pred_check
        %p526 = pneg %p525
      $region58: #{tpu_custom_call.1} parent=5 // pred_check_branch
        %528 = sbr.rel (%p526) target = $region60
      $region59: #{tpu_custom_call.1} parent=5 // pred_region
        %s529 = ssub.s32 %s17, 2
        // Predicated region
        $region61: #{tpu_custom_call.1} parent=59 // pred_check
          %p530 = pneg %p170
        $region62: #{tpu_custom_call.1} parent=59 // pred_check_branch
          %532 = sbr.rel (%p530) target = $region64
        $region63: #{tpu_custom_call.1} parent=59 // pred_region
          %s533 = sand.u32 %s155, 1
          %s534 = scalar_lea.sflag [#allocation5], %s533
          %s535 = sand.u32 %s155, 1
          %s536 = scalar_lea.vmem [#allocation6], %s535
          %537 = dma.done %s534, 16
        $region64: #{tpu_custom_call.1} parent=59 // pred_fallthru
          _
      $region60: #{tpu_custom_call.1} parent=5 // pred_fallthru
        _
    $region6: #{tpu_custom_call.1} parent=1 // loop_footer
      %s21 = sadd.s32 1, %s17
    $region7: #{tpu_custom_call.1} parent=1 // loop_footer_branch
      %16 = sbr.rel target = $region3
    $region8: #{tpu_custom_call.1} parent=1 // loop_exit
      _
    %538 = vsyncpa [#allocation4], 1
    %s539 = scalar_lea.sflag [#allocation4], 1
    %540 = vsyncpa %s539, 1
    %541 = vsyncpa [#allocation5], 1
    %s542 = scalar_lea.sflag [#allocation5], 1
    %543 = vsyncpa %s542, 1

</llo_original>
